<compile_context>
chip_gen: v7x
topology: tpu7x:2x2x1
jax: 0.10.0
libtpu: 0.0.40
codegen_flags: <defaults>
</compile_context>

<pallas_src>
import functools

import jax
import jax.numpy as jnp
from jax.experimental import pallas as pl
from jax.experimental.pallas import tpu as pltpu


def _round_up(x, m):
    return ((x + m - 1) // m) * m


# ---------------------------------------------------------------------------
# Kernel
# ---------------------------------------------------------------------------
def _pose_branch_kernel(num_layers, x_ref, w_ref, b_ref, o_ref):
    """Fused MLP forward for one tile of group-packed batch rows.

    x_ref : (TR, G*D)      bf16  packed batch tile (pipelined over the grid)
    w_ref : (L, G*D, G*D)  bf16  block-diagonal weights (VMEM-resident)
    b_ref : (L, 1, G*D)    f32   lane-tiled biases      (VMEM-resident)
    o_ref : (TR, G*D)      f32   full padded output slab (lane-dense store)
    """
    h = x_ref[...]                                       # bf16
    for k in range(num_layers):
        # bf16 MXU inputs, f32 accumulation; bias / LeakyReLU stay f32 (VPU).
        a = jnp.dot(h, w_ref[k], preferred_element_type=jnp.float32) + b_ref[k]
        if k != num_layers - 1:
            a = jnp.where(a > 0.0, a, 0.01 * a)          # LeakyReLU(0.01)
            h = a.astype(jnp.bfloat16)                   # back to bf16 for MXU
        else:
            o_ref[...] = a.astype(o_ref.dtype)


# ---------------------------------------------------------------------------
# One-time parameter packing (hoisted out of the forward path)
# ---------------------------------------------------------------------------
def pack_pose_branch_params(weights, biases, *, group=8):
    """Pack per-layer params into block-diagonal, MXU-filling arrays.

    group=8 fills the 256x256 MXU on v6e/v7x; group=4 matches v5e's 128-wide
    MXU tiles (group=8 also works there).  Call once at init.
    """
    num_layers = len(weights)
    out_dim = weights[-1].shape[1]
    feat = max([32] + [w.shape[0] for w in weights] + [w.shape[1] for w in weights])
    # Keep group*feat a multiple of 128 so all tiles are lane-dense.
    feat = _round_up(feat, max(8, 128 // group))
    gd = group * feat

    w_packed = jnp.zeros((num_layers, gd, gd), jnp.bfloat16)
    b_packed = jnp.zeros((num_layers, 1, gd), jnp.float32)
    for k, (w, b) in enumerate(zip(weights, biases)):
        din, dout = w.shape
        wb = w.astype(jnp.bfloat16)
        bf = b.reshape(1, -1).astype(jnp.float32)
        for g in range(group):
            r = g * feat
            w_packed = w_packed.at[k, r:r + din, r:r + dout].set(wb)
            b_packed = b_packed.at[k, :, r:r + dout].set(bf)

    return dict(w=w_packed, b=b_packed, num_layers=num_layers,
                feat=feat, out_dim=out_dim, group=group)


# ---------------------------------------------------------------------------
# Forward wrapper
# ---------------------------------------------------------------------------
def pose_branch_forward(x, params, *, block_rows=2048):
    """Run the PoseBranch MLP in one fused, batch-group-packed Pallas kernel.

    x: (B, z_dim) float array.  Returns (B, 4) float32.
    block_rows is in *packed* rows (each packed row carries `group` batch rows).
    """
    w_packed, b_packed = params["w"], params["b"]
    num_layers = params["num_layers"]
    feat, out_dim, group = params["feat"], params["out_dim"], params["group"]
    gd = group * feat

    B, z_dim = x.shape
    x = x.astype(jnp.bfloat16)              # MXU path is bf16 anyway; halves DMA
    b_pad = _round_up(B, group) - B
    f_pad = feat - z_dim
    if b_pad or f_pad:
        x = jnp.pad(x, ((0, b_pad), (0, f_pad)))
    rows = x.shape[0] // group
    xg = x.reshape(rows, gd)                # G batch rows packed along lanes

    block_rows = max(8, _round_up(block_rows, 8))
    if rows <= 8:
        tr = rows                           # one full-extent block
    else:
        # >=2 grid steps (v7x megacore), 8-aligned tiles, capped by block_rows.
        tr = min(block_rows, _round_up(pl.cdiv(rows, 2), 8))
    grid = (pl.cdiv(rows, tr),)

    kernel = functools.partial(_pose_branch_kernel, num_layers)
    out = pl.pallas_call(
        kernel,
        out_shape=jax.ShapeDtypeStruct((rows, gd), jnp.float32),
        grid=grid,
        in_specs=[
            pl.BlockSpec((tr, gd), lambda i: (i, 0)),                  # x tile
            pl.BlockSpec((num_layers, gd, gd), lambda i: (0, 0, 0)),   # weights
            pl.BlockSpec((num_layers, 1, gd), lambda i: (0, 0, 0)),    # biases
        ],
        out_specs=pl.BlockSpec((tr, gd), lambda i: (i, 0)),            # lane-dense
        compiler_params=pltpu.CompilerParams(
            dimension_semantics=("parallel",)),  # megacore sharding on v7x
    )(xg, w_packed, b_packed)

    # Un-pack the lane-dense slab: (rows, G*feat) -> (B_pad, feat) -> (B, 4).
    return out.reshape(rows * group, feat)[:B, :out_dim]


# ---------------------------------------------------------------------------
# Parameter init (matches torch init_weights: xavier_uniform, bias = 0.01)
# ---------------------------------------------------------------------------
def init_pose_branch_params(key, z_dim, num_layers, f_dim=32, final_dim=4):
    weights, biases = [], []
    for k in range(num_layers):
        inp_dim = z_dim if k == 0 else f_dim
        out_dim = final_dim if k == num_layers - 1 else f_dim
        key, sub = jax.random.split(key)
        bound = (6.0 / (inp_dim + out_dim)) ** 0.5
        # torch stores (out, in); we store (in, out) so x @ W == x @ torch_W.T.
        w = jax.random.uniform(sub, (inp_dim, out_dim), jnp.float32,
                               minval=-bound, maxval=bound)
        b = jnp.full((1, out_dim), 0.01, jnp.float32)
        weights.append(w)
        biases.append(b)
    return weights, biases


if __name__ == "__main__":
    # cfg.z_dim = 32, cfg.pose_candidates_num_layers = 3
    z_dim = 32
    num_layers = 3
    batch = 128   # with group=8 -> 16 packed rows -> 2 grid steps (pipelined)

    key = jax.random.PRNGKey(0)
    key, xkey = jax.random.split(key)
    x = jax.random.normal(xkey, (batch, z_dim), jnp.float32)

    weights, biases = init_pose_branch_params(key, z_dim, num_layers)
    params = pack_pose_branch_params(weights, biases, group=8)

    out = jax.block_until_ready(pose_branch_forward(x, params))

    # Pure-JAX f32 reference (kernel uses bf16 MXU inputs, f32 accumulation).
    h = x
    for k in range(num_layers):
        h = h @ weights[k] + biases[k]
        if k != num_layers - 1:
            h = jnp.where(h > 0.0, h, 0.01 * h)
    ref = jax.block_until_ready(h)

    assert out.shape == (batch, 4), out.shape
    assert jnp.allclose(out, ref, atol=5e-2, rtol=5e-2), "mismatch vs reference"
    print("KERNEL_OK")
</pallas_src>

<mosaic_0001>
module attributes {stable_mosaic.version = 11 : i64} {
  func.func @_pose_branch_kernel(%arg0: i32, %arg1: memref<8x256xbf16, #tpu.memory_space<vmem>>, %arg2: memref<3x256x256xbf16, #tpu.memory_space<vmem>>, %arg3: memref<3x1x256xf32, #tpu.memory_space<vmem>>, %arg4: memref<8x256xf32, #tpu.memory_space<vmem>>) attributes {dimension_semantics = [#tpu.dimension_semantics<parallel>], iteration_bounds = array<i64: 2>, scalar_prefetch = 0 : i64, scratch_operands = 0 : i64, tpu.core_type = #tpu.core_type<tc>, window_params = [{transform_indices = @transform_0, window_bounds = array<i64: 8, 256>}, {pipeline_mode = #tpu.pipeline_mode<synchronous>, transform_indices = @transform_1, window_bounds = array<i64: 3, 256, 256>}, {pipeline_mode = #tpu.pipeline_mode<synchronous>, transform_indices = @transform_2, window_bounds = array<i64: 3, 1, 256>}, {transform_indices = @transform_3, window_bounds = array<i64: 8, 256>}]} {
    %c0 = arith.constant 0 : index
    %c0_0 = arith.constant 0 : index
    %0 = vector.load %arg1[%c0, %c0_0] : memref<8x256xbf16, #tpu.memory_space<vmem>>, vector<8x256xbf16>
    %c0_1 = arith.constant 0 : index
    %c0_2 = arith.constant 0 : index
    %c0_3 = arith.constant 0 : index
    %1 = vector.load %arg2[%c0_1, %c0_2, %c0_3] : memref<3x256x256xbf16, #tpu.memory_space<vmem>>, vector<1x256x256xbf16>
    %2 = vector.shape_cast %1 : vector<1x256x256xbf16> to vector<256x256xbf16>
    %cst = arith.constant dense<0.000000e+00> : vector<8x256xf32>
    %3 = tpu.matmul %0, %2, %cst {dimension_numbers = #tpu.dot_dimension_numbers<[1], [0], [0], [1], [0, 0, 1, 1], [], []>} : vector<8x256xbf16>, vector<256x256xbf16>, vector<8x256xf32> -> vector<8x256xf32>
    %c0_4 = arith.constant 0 : index
    %c0_5 = arith.constant 0 : index
    %c0_6 = arith.constant 0 : index
    %4 = vector.load %arg3[%c0_4, %c0_5, %c0_6] : memref<3x1x256xf32, #tpu.memory_space<vmem>>, vector<1x1x256xf32>
    %5 = vector.shape_cast %4 : vector<1x1x256xf32> to vector<1x256xf32>
    %6 = vector.broadcast %5 : vector<1x256xf32> to vector<8x256xf32>
    %7 = arith.addf %3, %6 : vector<8x256xf32>
    %cst_7 = arith.constant 0.000000e+00 : f32
    %8 = vector.broadcast %cst_7 : f32 to vector<8x256xf32>
    %9 = arith.cmpf ogt, %7, %8 : vector<8x256xf32>
    %cst_8 = arith.constant 0.00999999977 : f32
    %10 = vector.broadcast %cst_8 : f32 to vector<8x256xf32>
    %11 = arith.mulf %10, %7 : vector<8x256xf32>
    %12 = arith.select %9, %7, %11 : vector<8x256xi1>, vector<8x256xf32>
    %13 = arith.truncf %12 : vector<8x256xf32> to vector<8x256xbf16>
    %c1 = arith.constant 1 : index
    %c0_9 = arith.constant 0 : index
    %c0_10 = arith.constant 0 : index
    %14 = vector.load %arg2[%c1, %c0_9, %c0_10] : memref<3x256x256xbf16, #tpu.memory_space<vmem>>, vector<1x256x256xbf16>
    %15 = vector.shape_cast %14 : vector<1x256x256xbf16> to vector<256x256xbf16>
    %cst_11 = arith.constant dense<0.000000e+00> : vector<8x256xf32>
    %16 = tpu.matmul %13, %15, %cst_11 {dimension_numbers = #tpu.dot_dimension_numbers<[1], [0], [0], [1], [0, 0, 1, 1], [], []>} : vector<8x256xbf16>, vector<256x256xbf16>, vector<8x256xf32> -> vector<8x256xf32>
    %c1_12 = arith.constant 1 : index
    %c0_13 = arith.constant 0 : index
    %c0_14 = arith.constant 0 : index
    %17 = vector.load %arg3[%c1_12, %c0_13, %c0_14] : memref<3x1x256xf32, #tpu.memory_space<vmem>>, vector<1x1x256xf32>
    %18 = vector.shape_cast %17 : vector<1x1x256xf32> to vector<1x256xf32>
    %19 = vector.broadcast %18 : vector<1x256xf32> to vector<8x256xf32>
    %20 = arith.addf %16, %19 : vector<8x256xf32>
    %cst_15 = arith.constant 0.000000e+00 : f32
    %21 = vector.broadcast %cst_15 : f32 to vector<8x256xf32>
    %22 = arith.cmpf ogt, %20, %21 : vector<8x256xf32>
    %cst_16 = arith.constant 0.00999999977 : f32
    %23 = vector.broadcast %cst_16 : f32 to vector<8x256xf32>
    %24 = arith.mulf %23, %20 : vector<8x256xf32>
    %25 = arith.select %22, %20, %24 : vector<8x256xi1>, vector<8x256xf32>
    %26 = arith.truncf %25 : vector<8x256xf32> to vector<8x256xbf16>
    %c2 = arith.constant 2 : index
    %c0_17 = arith.constant 0 : index
    %c0_18 = arith.constant 0 : index
    %27 = vector.load %arg2[%c2, %c0_17, %c0_18] : memref<3x256x256xbf16, #tpu.memory_space<vmem>>, vector<1x256x256xbf16>
    %28 = vector.shape_cast %27 : vector<1x256x256xbf16> to vector<256x256xbf16>
    %cst_19 = arith.constant dense<0.000000e+00> : vector<8x256xf32>
    %29 = tpu.matmul %26, %28, %cst_19 {dimension_numbers = #tpu.dot_dimension_numbers<[1], [0], [0], [1], [0, 0, 1, 1], [], []>} : vector<8x256xbf16>, vector<256x256xbf16>, vector<8x256xf32> -> vector<8x256xf32>
    %c2_20 = arith.constant 2 : index
    %c0_21 = arith.constant 0 : index
    %c0_22 = arith.constant 0 : index
    %30 = vector.load %arg3[%c2_20, %c0_21, %c0_22] : memref<3x1x256xf32, #tpu.memory_space<vmem>>, vector<1x1x256xf32>
    %31 = vector.shape_cast %30 : vector<1x1x256xf32> to vector<1x256xf32>
    %32 = vector.broadcast %31 : vector<1x256xf32> to vector<8x256xf32>
    %33 = arith.addf %29, %32 : vector<8x256xf32>
    %c0_23 = arith.constant 0 : index
    %c0_24 = arith.constant 0 : index
    %34 = vector.load %arg4[%c0_23, %c0_24] : memref<8x256xf32, #tpu.memory_space<vmem>>, vector<8x256xf32>
    tpu.vector_store %arg4[%c0_23, %c0_24], %33 {strides = array<i32>} : memref<8x256xf32, #tpu.memory_space<vmem>>, vector<8x256xf32>,
    return
  }
  func.func @transform_0(%arg0: i32) -> (i32, i32) {
    %c0_i32 = arith.constant 0 : i32
    %c0_i32_0 = arith.constant 0 : i32
    return %arg0, %c0_i32 : i32, i32
  }
  func.func @transform_1(%arg0: i32) -> (i32, i32, i32) {
    %c0_i32 = arith.constant 0 : i32
    %c0_i32_0 = arith.constant 0 : i32
    %c0_i32_1 = arith.constant 0 : i32
    %c0_i32_2 = arith.constant 0 : i32
    return %c0_i32, %c0_i32_0, %c0_i32_1 : i32, i32, i32
  }
  func.func @transform_2(%arg0: i32) -> (i32, i32, i32) {
    %c0_i32 = arith.constant 0 : i32
    %c0_i32_0 = arith.constant 0 : i32
    %c0_i32_1 = arith.constant 0 : i32
    %c0_i32_2 = arith.constant 0 : i32
    return %c0_i32, %c0_i32_0, %c0_i32_1 : i32, i32, i32
  }
  func.func @transform_3(%arg0: i32) -> (i32, i32) {
    %c0_i32 = arith.constant 0 : i32
    %c0_i32_0 = arith.constant 0 : i32
    return %arg0, %c0_i32 : i32, i32
  }
}

</mosaic_0001>

<llo_original>
// kernel: tpu_custom_call.1
$region0: #{tpu_custom_call.1}
  #allocation0 [shape = 'u32[]', space=smem, size = 0x4, offset = 0x4, fixed_abs, tag = 'smem constant byte address 0x4 - core index']
  #allocation1 [shape = 'u32[144,128]{1,0:T(1,128)}', space=vmem, size = 0x12000, scoped, tag = 'internal scratch']
  %s0 = inlined_call_operand.hbm [shape: bf16[16,256], index: 0, kind: input, shape index: {}]
  %s1 = inlined_call_operand.hbm [shape: bf16[3,256,256], index: 1, kind: input, shape index: {}]
  %s2 = inlined_call_operand.vmem [shape: f32[3,1,256], index: 2, kind: input, shape index: {}]
  %s3 = inlined_call_operand.hbm [shape: f32[16,256], index: 3, kind: output, shape index: {}]
  %s4 = sld [smem:[#allocation0]]
  $region53: #{tpu_custom_call.1} parent=0
    _
  %s6 = ssub.s32 1, %s4
  %s7 = scalar_select 0, %s6, %s4
  $region1: #{tpu_custom_call.1} parent=0
    #allocation2 [shape = 'u8[8192]{0}', space=vmem, size = 0x2000, scoped, tag = 'input window, operand 0']
    #allocation3 [shape = 's32[2]{0}', space=sflag, size = 0x8, scoped, tag = 'scoped memory for tpu_custom_call.1']
    #allocation4 [shape = 's32[2]{0}', space=sflag, size = 0x8, scoped, tag = 'scoped memory for tpu_custom_call.1']
    #allocation5 [shape = 'u8[393216]{0}', space=vmem, size = 0x60000, scoped, tag = 'input window, operand 1, single buffered']
    #allocation6 [shape = 's32[1]{0}', space=sflag, size = 0x4, scoped, tag = 'scoped memory for tpu_custom_call.1']
    #allocation7 [shape = 'u8[16384]{0}', space=vmem, size = 0x4000, scoped, tag = 'output window, operand 0']
    %8 = vsyncpa [#allocation3], 0
    %s9 = scalar_lea.sflag [#allocation3], 1
    %10 = vsyncpa %s9, 0
    %11 = vsyncpa [#allocation6], 0
    %12 = vsyncpa [#allocation4], 0
    %s13 = scalar_lea.sflag [#allocation4], 1
    %14 = vsyncpa %s13, 0
    loop: start=0, step=1, limit=4
    $region2: #{tpu_custom_call.1} parent=1 // loop_pre_header
      _
    $region3: #{tpu_custom_call.1} parent=1 // loop_header
      %s16 = sphi 0, %s20
      %p17 = scmp.ge.s32.totalorder %s16, 4
      %s26 = sphi 0, %s28
      %s29 = sphi 0, %s26
      %s30 = sphi 0, %s29
      %s46 = sphi 0, %s30
      %s50 = sphi 0, %s50
      %s52 = sphi 0, %s50
      %s53 = sphi 0, %s52
      %s67 = sphi 0, %s53
      %s71 = sphi 0, %s71
      %s73 = sphi 0, %s71
      %s74 = sphi 0, %s73
      %s88 = sphi 0, %s74
      %s94 = sphi 0, %s96
      %s97 = sphi 0, %s94
      %s98 = sphi 0, %s97
      %s114 = sphi 0, %s98
    $region4: #{tpu_custom_call.1} parent=1 // loop_header_branch
      %19 = sbr.rel (%p17) target = $region8
    $region5: #{tpu_custom_call.1} parent=1 // loop_body
      %s21 = ssub.s32 %s16, 1
      %s22 = ssub.s32 %s16, 2
      %s23 = sadd.s32 %s16, 1
      %s24 = ssub.s32 %s16, %s23
      %p25 = scmp.eq.s32.totalorder %s24, 0
      %s27 = sadd.s32 %s26, 1
      %s28 = scalar_select %p25, %s26, %s27
      %p31 = pneg %p25
      %p32 = scmp.eq.s32.totalorder %s16, 1
      %p33 = por %p31, %p32
      %p34 = scmp.ne.s32.totalorder %s26, %s29
      %p35 = scmp.eq.s32.totalorder %s16, 0
      %p36 = por %p34, %p35
      %p37 = scmp.ne.s32.totalorder %s26, %s29
      %p38 = scmp.eq.s32.totalorder %s21, 1
      %p39 = por %p37, %p38
      %p40 = scmp.ne.s32.totalorder %s29, %s30
      %p41 = scmp.eq.s32.totalorder %s21, 0
      %p42 = por %p40, %p41
      %p43 = scmp.ne.s32.totalorder %s29, %s30
      %p44 = scmp.eq.s32.totalorder %s22, 1
      %p45 = por %p43, %p44
      %p47 = scmp.ne.s32.totalorder %s30, %s46
      %p48 = scmp.eq.s32.totalorder %s22, 0
      %p49 = por %p47, %p48
      %s51 = sadd.s32 %s50, 1
      %p54 = scmp.eq.s32.totalorder %s16, 1
      %p55 = scmp.ne.s32.totalorder %s50, %s52
      %p56 = scmp.eq.s32.totalorder %s16, 0
      %p57 = por %p55, %p56
      %p58 = scmp.ne.s32.totalorder %s50, %s52
      %p59 = scmp.eq.s32.totalorder %s21, 1
      %p60 = por %p58, %p59
      %p61 = scmp.ne.s32.totalorder %s52, %s53
      %p62 = scmp.eq.s32.totalorder %s21, 0
      %p63 = por %p61, %p62
      %p64 = scmp.ne.s32.totalorder %s52, %s53
      %p65 = scmp.eq.s32.totalorder %s22, 1
      %p66 = por %p64, %p65
      %p68 = scmp.ne.s32.totalorder %s53, %s67
      %p69 = scmp.eq.s32.totalorder %s22, 0
      %p70 = por %p68, %p69
      %s72 = sadd.s32 %s71, 1
      %p75 = scmp.eq.s32.totalorder %s16, 1
      %p76 = scmp.ne.s32.totalorder %s71, %s73
      %p77 = scmp.eq.s32.totalorder %s16, 0
      %p78 = por %p76, %p77
      %p79 = scmp.ne.s32.totalorder %s71, %s73
      %p80 = scmp.eq.s32.totalorder %s21, 1
      %p81 = por %p79, %p80
      %p82 = scmp.ne.s32.totalorder %s73, %s74
      %p83 = scmp.eq.s32.totalorder %s21, 0
      %p84 = por %p82, %p83
      %p85 = scmp.ne.s32.totalorder %s73, %s74
      %p86 = scmp.eq.s32.totalorder %s22, 1
      %p87 = por %p85, %p86
      %p89 = scmp.ne.s32.totalorder %s74, %s88
      %p90 = scmp.eq.s32.totalorder %s22, 0
      %p91 = por %p89, %p90
      %s92 = ssub.s32 %s16, %s23
      %p93 = scmp.eq.s32.totalorder %s92, 0
      %s95 = sadd.s32 %s94, 1
      %s96 = scalar_select %p93, %s94, %s95
      %p99 = pneg %p93
      %p100 = scmp.eq.s32.totalorder %s16, 1
      %p101 = por %p99, %p100
      %p102 = scmp.ne.s32.totalorder %s94, %s97
      %p103 = scmp.eq.s32.totalorder %s16, 0
      %p104 = por %p102, %p103
      %p105 = scmp.ne.s32.totalorder %s94, %s97
      %p106 = scmp.eq.s32.totalorder %s21, 1
      %p107 = por %p105, %p106
      %p108 = scmp.ne.s32.totalorder %s97, %s98
      %p109 = scmp.eq.s32.totalorder %s21, 0
      %p110 = por %p108, %p109
      %p111 = scmp.ne.s32.totalorder %s97, %s98
      %p112 = scmp.eq.s32.totalorder %s22, 1
      %p113 = por %p111, %p112
      %p115 = scmp.ne.s32.totalorder %s98, %s114
      %p116 = scmp.eq.s32.totalorder %s22, 0
      %p117 = por %p115, %p116
      %p118 = scmp.le.s32.totalorder 1, %s16
      %p119 = scmp.lt.s32.totalorder %s16, 3
      %p120 = pnand %p118, %p119
      %p121 = pneg %p120
      // Predicated region
      $region9: #{tpu_custom_call.1} parent=5 // pred_check
        _
      $region10: #{tpu_custom_call.1} parent=5 // pred_check_branch
        %123 = sbr.rel (%p120) target = $region12
      $region11: #{tpu_custom_call.1} parent=5 // pred_region
        %s124 = ssub.s32 %s16, 1
        // Predicated region
        $region13: #{tpu_custom_call.1} parent=11 // pred_check
          %p125 = pneg %p63
        $region14: #{tpu_custom_call.1} parent=11 // pred_check_branch
          %127 = sbr.rel (%p125) target = $region16
        $region15: #{tpu_custom_call.1} parent=11 // pred_region
          %s129 = ssub.s32 12288, 12288
          %130 = vsyncadd [#allocation6], %s129
          %s131 = sshll.u32 [#allocation5], 4
          %s132 = int_to_ptr.vmem [resolvable:$true] %s131
          %137 = dma.hbm_to_vmem [thread:$0]  %s1, 12288, %s132, [#allocation6], 128, 128, 8
        $region16: #{tpu_custom_call.1} parent=11 // pred_fallthru
          _
        // Predicated region
        $region17: #{tpu_custom_call.1} parent=11 // pred_check
          %p138 = pneg %p84
        $region18: #{tpu_custom_call.1} parent=11 // pred_check_branch
          %140 = sbr.rel (%p138) target = $region20
        $region19: #{tpu_custom_call.1} parent=11 // pred_region
          _
        $region20: #{tpu_custom_call.1} parent=11 // pred_fallthru
          _
      $region12: #{tpu_custom_call.1} parent=5 // pred_fallthru
        _
      %p141 = scmp.lt.s32.totalorder %s16, 2
      // Predicated region
      $region21: #{tpu_custom_call.1} parent=5 // pred_check
        %p142 = pneg %p141
      $region22: #{tpu_custom_call.1} parent=5 // pred_check_branch
        %144 = sbr.rel (%p142) target = $region24
      $region23: #{tpu_custom_call.1} parent=5 // pred_region
        // Predicated region
        $region25: #{tpu_custom_call.1} parent=23 // pred_check
          %p145 = pneg %p36
        $region26: #{tpu_custom_call.1} parent=23 // pred_check_branch
          %147 = sbr.rel (%p145) target = $region28
        $region27: #{tpu_custom_call.1} parent=23 // pred_region
          %s148 = sand.u32 %s26, 1
          %s149 = scalar_lea.sflag [#allocation3], %s148
          %s150 = sand.u32 %s26, 1
          %s151 = smul.addr %s150, 8
          %s152 = scalar_lea.vmem [#allocation2], %s151
          %s154 = ssub.s32 128, 128
          %155 = vsyncadd %s149, %s154
          %s156 = smul.addr %s16, 2
          %s157 = smul.addr %s156, 64
          %s158 = scalar_lea.hbm %s0, %s157
          %s160 = sshll.u32 %s152, 4
          %s161 = int_to_ptr.vmem [resolvable:$true] %s160
          %163 = dma.hbm_to_vmem [thread:$0]  %s158, 128, %s161, %s149
        $region28: #{tpu_custom_call.1} parent=23 // pred_fallthru
          _
      $region24: #{tpu_custom_call.1} parent=5 // pred_fallthru
        _
      %p164 = scmp.le.s32.totalorder 1, %s16
      %p165 = scmp.lt.s32.totalorder %s16, 3
      %p166 = pnand %p164, %p165
      %p167 = pneg %p166
      // Predicated region
      $region29: #{tpu_custom_call.1} parent=5 // pred_check
        _
      $region30: #{tpu_custom_call.1} parent=5 // pred_check_branch
        %169 = sbr.rel (%p166) target = $region32
      $region31: #{tpu_custom_call.1} parent=5 // pred_region
        %s170 = ssub.s32 %s16, 1
        %s171 = sand.u32 %s29, 1
        %s172 = scalar_lea.sflag [#allocation3], %s171
        %s173 = sand.u32 %s29, 1
        %s174 = smul.addr %s173, 8
        %s175 = scalar_lea.vmem [#allocation2], %s174
        // Predicated region
        $region33: #{tpu_custom_call.1} parent=31 // pred_check
          %p176 = pneg %p42
        $region34: #{tpu_custom_call.1} parent=31 // pred_check_branch
          %178 = sbr.rel (%p176) target = $region36
        $region35: #{tpu_custom_call.1} parent=31 // pred_region
          %179 = dma.done %s172, 128
        $region36: #{tpu_custom_call.1} parent=31 // pred_fallthru
          _
        // Predicated region
        $region37: #{tpu_custom_call.1} parent=31 // pred_check
          %p180 = pneg %p63
        $region38: #{tpu_custom_call.1} parent=31 // pred_check_branch
          %182 = sbr.rel (%p180) target = $region40
        $region39: #{tpu_custom_call.1} parent=31 // pred_region
          %183 = dma.done [#allocation6], 12288
        $region40: #{tpu_custom_call.1} parent=31 // pred_fallthru
          _
        %s184 = sand.u32 %s29, 1
        %s185 = scalar_lea.sflag [#allocation3], %s184
        %s186 = sand.u32 %s29, 1
        %s187 = smul.addr %s186, 8
        %s188 = scalar_lea.vmem [#allocation2], %s187
        %p189 = pneg %p42
        %p190 = pneg %p39
        %p191 = pneg %p63
        %p192 = pneg %p60
        %p193 = pneg %p84
        %p194 = pneg %p81
        %p195 = pneg %p110
        %p196 = pneg %p107
        %s197 = sand.u32 %s97, 1
        %s198 = scalar_lea.sflag [#allocation4], %s197
        %s199 = sand.u32 %s97, 1
        %s200 = smul.addr %s199, 16
        %s201 = scalar_lea.vmem [#allocation7], %s200
        %v202 = vld [vmem:[%s175] sm:$0xff]
        %v203 = vld [vmem:[#allocation5] sm:$0xff]
        %v204 = vld [vmem:[#allocation5 + $0x8] sm:$0xff]
        %v205 = vld [vmem:[#allocation5 + $0x10] sm:$0xff]
        %v206 = vld [vmem:[#allocation5 + $0x18] sm:$0xff]
        %v207 = vld [vmem:[#allocation5 + $0x20] sm:$0xff]
        %v208 = vld [vmem:[#allocation5 + $0x28] sm:$0xff]
        %v209 = vld [vmem:[#allocation5 + $0x30] sm:$0xff]
        %v210 = vld [vmem:[#allocation5 + $0x38] sm:$0xff]
        %v211 = vld [vmem:[#allocation5 + $0x40] sm:$0xff]
        %v212 = vld [vmem:[#allocation5 + $0x48] sm:$0xff]
        %v213 = vld [vmem:[#allocation5 + $0x50] sm:$0xff]
        %v214 = vld [vmem:[#allocation5 + $0x58] sm:$0xff]
        %v215 = vld [vmem:[#allocation5 + $0x60] sm:$0xff]
        %v216 = vld [vmem:[#allocation5 + $0x68] sm:$0xff]
        %v217 = vld [vmem:[#allocation5 + $0x70] sm:$0xff]
        %v218 = vld [vmem:[#allocation5 + $0x78] sm:$0xff]
        %v219 = vld [vmem:[#allocation5 + $0x80] sm:$0xff]
        %v220 = vld [vmem:[#allocation5 + $0x88] sm:$0xff]
        %v221 = vld [vmem:[#allocation5 + $0x90] sm:$0xff]
        %v222 = vld [vmem:[#allocation5 + $0x98] sm:$0xff]
        %v223 = vld [vmem:[#allocation5 + $0xa0] sm:$0xff]
        %v224 = vld [vmem:[#allocation5 + $0xa8] sm:$0xff]
        %v225 = vld [vmem:[#allocation5 + $0xb0] sm:$0xff]
        %v226 = vld [vmem:[#allocation5 + $0xb8] sm:$0xff]
        %v227 = vld [vmem:[#allocation5 + $0xc0] sm:$0xff]
        %v228 = vld [vmem:[#allocation5 + $0xc8] sm:$0xff]
        %v229 = vld [vmem:[#allocation5 + $0xd0] sm:$0xff]
        %v230 = vld [vmem:[#allocation5 + $0xd8] sm:$0xff]
        %v231 = vld [vmem:[#allocation5 + $0xe0] sm:$0xff]
        %v232 = vld [vmem:[#allocation5 + $0xe8] sm:$0xff]
        %v233 = vld [vmem:[#allocation5 + $0xf0] sm:$0xff]
        %v234 = vld [vmem:[#allocation5 + $0xf8] sm:$0xff]
        %v235 = vld [vmem:[%s2] sm:$0x3]
        %v237 = vlaneseq
        %v238 = vshrl.u32 %v237, 7
        %v239 = vsub.s32 0, %v238
        %v240 = vrot.slane %v235, %v239
        %v241 = vlaneseq
        %v242 = vshrl.u32 %v241, 7
        %v243 = vsub.s32 1, %v242
        %v244 = vrot.slane %v235, %v243
        %v248 = vunpack.c.l.b16 %v202
        %v249 = vunpack.c.h.b16 %v202
        %v250 = vpack.c.b16 %v248, %v248
        %v251 = vpack.c.b16 %v249, %v249
        %v286 = vunpack.c.l.b16 %v203
        %v287 = vunpack.c.h.b16 %v203
        %v288 = vunpack.c.l.b16 %v204
        %v289 = vunpack.c.h.b16 %v204
        %v290 = vunpack.c.l.b16 %v205
        %v291 = vunpack.c.h.b16 %v205
        %v292 = vunpack.c.l.b16 %v206
        %v293 = vunpack.c.h.b16 %v206
        %v294 = vunpack.c.l.b16 %v207
        %v295 = vunpack.c.h.b16 %v207
        %v296 = vunpack.c.l.b16 %v208
        %v297 = vunpack.c.h.b16 %v208
        %v298 = vunpack.c.l.b16 %v209
        %v299 = vunpack.c.h.b16 %v209
        %v300 = vunpack.c.l.b16 %v210
        %v301 = vunpack.c.h.b16 %v210
        %v302 = vunpack.c.l.b16 %v211
        %v303 = vunpack.c.h.b16 %v211
        %v304 = vunpack.c.l.b16 %v212
        %v305 = vunpack.c.h.b16 %v212
        %v306 = vunpack.c.l.b16 %v213
        %v307 = vunpack.c.h.b16 %v213
        %v308 = vunpack.c.l.b16 %v214
        %v309 = vunpack.c.h.b16 %v214
        %v310 = vunpack.c.l.b16 %v215
        %v311 = vunpack.c.h.b16 %v215
        %v312 = vunpack.c.l.b16 %v216
        %v313 = vunpack.c.h.b16 %v216
        %v314 = vunpack.c.l.b16 %v217
        %v315 = vunpack.c.h.b16 %v217
        %v316 = vunpack.c.l.b16 %v218
        %v317 = vunpack.c.h.b16 %v218
        %v318 = vunpack.c.l.b16 %v219
        %v319 = vunpack.c.h.b16 %v219
        %v320 = vunpack.c.l.b16 %v220
        %v321 = vunpack.c.h.b16 %v220
        %v322 = vunpack.c.l.b16 %v221
        %v323 = vunpack.c.h.b16 %v221
        %v324 = vunpack.c.l.b16 %v222
        %v325 = vunpack.c.h.b16 %v222
        %v326 = vunpack.c.l.b16 %v223
        %v327 = vunpack.c.h.b16 %v223
        %v328 = vunpack.c.l.b16 %v224
        %v329 = vunpack.c.h.b16 %v224
        %v330 = vunpack.c.l.b16 %v225
        %v331 = vunpack.c.h.b16 %v225
        %v332 = vunpack.c.l.b16 %v226
        %v333 = vunpack.c.h.b16 %v226
        %v334 = vunpack.c.l.b16 %v227
        %v335 = vunpack.c.h.b16 %v227
        %v336 = vunpack.c.l.b16 %v228
        %v337 = vunpack.c.h.b16 %v228
        %v338 = vunpack.c.l.b16 %v229
        %v339 = vunpack.c.h.b16 %v229
        %v340 = vunpack.c.l.b16 %v230
        %v341 = vunpack.c.h.b16 %v230
        %v342 = vunpack.c.l.b16 %v231
        %v343 = vunpack.c.h.b16 %v231
        %v344 = vunpack.c.l.b16 %v232
        %v345 = vunpack.c.h.b16 %v232
        %v346 = vunpack.c.l.b16 %v233
        %v347 = vunpack.c.h.b16 %v233
        %v348 = vunpack.c.l.b16 %v234
        %v349 = vunpack.c.h.b16 %v234
        %v350 = vpack.c.b16 %v288, %v286
        %v351 = vpack.c.b16 %v289, %v287
        %v352 = vpack.c.b16 %v292, %v290
        %v353 = vpack.c.b16 %v293, %v291
        %v354 = vpack.c.b16 %v296, %v294
        %v355 = vpack.c.b16 %v297, %v295
        %v356 = vpack.c.b16 %v300, %v298
        %v357 = vpack.c.b16 %v301, %v299
        %v358 = vpack.c.b16 %v304, %v302
        %v359 = vpack.c.b16 %v305, %v303
        %v360 = vpack.c.b16 %v308, %v306
        %v361 = vpack.c.b16 %v309, %v307
        %v362 = vpack.c.b16 %v312, %v310
        %v363 = vpack.c.b16 %v313, %v311
        %v364 = vpack.c.b16 %v316, %v314
        %v365 = vpack.c.b16 %v317, %v315
        %v366 = vpack.c.b16 %v320, %v318
        %v367 = vpack.c.b16 %v321, %v319
        %v368 = vpack.c.b16 %v324, %v322
        %v369 = vpack.c.b16 %v325, %v323
        %v370 = vpack.c.b16 %v328, %v326
        %v371 = vpack.c.b16 %v329, %v327
        %v372 = vpack.c.b16 %v332, %v330
        %v373 = vpack.c.b16 %v333, %v331
        %v374 = vpack.c.b16 %v336, %v334
        %v375 = vpack.c.b16 %v337, %v335
        %v376 = vpack.c.b16 %v340, %v338
        %v377 = vpack.c.b16 %v341, %v339
        %v378 = vpack.c.b16 %v344, %v342
        %v379 = vpack.c.b16 %v345, %v343
        %v380 = vpack.c.b16 %v348, %v346
        %v381 = vpack.c.b16 %v349, %v347
        %414 = vmatprep.subr.bf16.mxu0 %v351
        %415 = vmatpush1.bf16.msra.mxu0 %v350
        %416 = vmatprep.subr.bf16.mxu0 %v353
        %417 = vmatpush1.bf16.msra.mxu0 %v352
        %418 = vmatprep.subr.bf16.mxu0 %v355
        %419 = vmatpush1.bf16.msra.mxu0 %v354
        %420 = vmatprep.subr.bf16.mxu0 %v357
        %421 = vmatpush1.bf16.msra.mxu0 %v356
        %422 = vmatprep.subr.bf16.mxu0 %v359
        %423 = vmatpush1.bf16.msra.mxu0 %v358
        %424 = vmatprep.subr.bf16.mxu0 %v361
        %425 = vmatpush1.bf16.msra.mxu0 %v360
        %426 = vmatprep.subr.bf16.mxu0 %v363
        %427 = vmatpush1.bf16.msra.mxu0 %v362
        %428 = vmatprep.subr.bf16.mxu0 %v365
        %429 = vmatpush1.bf16.msra.mxu0 %v364
        %430 = vmatprep.subr.bf16.mxu0 %v367
        %431 = vmatpush1.bf16.msra.mxu0 %v366
        %432 = vmatprep.subr.bf16.mxu0 %v369
        %433 = vmatpush1.bf16.msra.mxu0 %v368
        %434 = vmatprep.subr.bf16.mxu0 %v371
        %435 = vmatpush1.bf16.msra.mxu0 %v370
        %436 = vmatprep.subr.bf16.mxu0 %v373
        %437 = vmatpush1.bf16.msra.mxu0 %v372
        %438 = vmatprep.subr.bf16.mxu0 %v375
        %439 = vmatpush1.bf16.msra.mxu0 %v374
        %440 = vmatprep.subr.bf16.mxu0 %v377
        %441 = vmatpush1.bf16.msra.mxu0 %v376
        %442 = vmatprep.subr.bf16.mxu0 %v379
        %443 = vmatpush1.bf16.msra.mxu0 %v378
        %444 = vmatprep.subr.bf16.mxu0 %v381
        %445 = vmatpush1.bf16.msra.mxu0 %v380
        %446 = vmatprep.mubr.bf16.mxu0 %v251
        %447 = vmatmul.mubr.bf16.gmra.mrb[0].mxu0 %v250
        %v448 = vpop.f32.mrb[0].mxu0
        %v449 = vadd.f32 %v240, %v448
        %v450 = vpop.f32.mrb[0].mxu0
        %v451 = vadd.f32 %v244, %v450
        %v452 = vpop.f32.mrb[0].mxu0
        %v453 = vpop.f32.mrb[0].mxu0
        %454 = vdwg.mxu0
        %vm455 = vcmp.gt.f32.partialorder %v449, 0.0
        %vm456 = vcmp.gt.f32.partialorder %v451, 0.0
        %v457 = vmul.f32 %v449, 0.01
        %v458 = vmul.f32 %v451, 0.01
        %v459 = vsel %vm455, %v449, %v457
        %v460 = vsel %vm456, %v451, %v458
        %v461 = vpack.c.bf16 %v459, %v459
        %v462 = vpack.c.bf16 %v460, %v460
        %s463 = scalar_lea.vmem [#allocation5], 256
        %v464 = vld [vmem:[%s463] sm:$0xff]
        %v465 = vld [vmem:[%s463 + $0x8] sm:$0xff]
        %v466 = vld [vmem:[%s463 + $0x10] sm:$0xff]
        %v467 = vld [vmem:[%s463 + $0x18] sm:$0xff]
        %v468 = vld [vmem:[%s463 + $0x20] sm:$0xff]
        %v469 = vld [vmem:[%s463 + $0x28] sm:$0xff]
        %v470 = vld [vmem:[%s463 + $0x30] sm:$0xff]
        %v471 = vld [vmem:[%s463 + $0x38] sm:$0xff]
        %v472 = vld [vmem:[%s463 + $0x40] sm:$0xff]
        %v473 = vld [vmem:[%s463 + $0x48] sm:$0xff]
        %v474 = vld [vmem:[%s463 + $0x50] sm:$0xff]
        %v475 = vld [vmem:[%s463 + $0x58] sm:$0xff]
        %v476 = vld [vmem:[%s463 + $0x60] sm:$0xff]
        %v477 = vld [vmem:[%s463 + $0x68] sm:$0xff]
        %v478 = vld [vmem:[%s463 + $0x70] sm:$0xff]
        %v479 = vld [vmem:[%s463 + $0x78] sm:$0xff]
        %v480 = vld [vmem:[%s463 + $0x80] sm:$0xff]
        %v481 = vld [vmem:[%s463 + $0x88] sm:$0xff]
        %v482 = vld [vmem:[%s463 + $0x90] sm:$0xff]
        %v483 = vld [vmem:[%s463 + $0x98] sm:$0xff]
        %v484 = vld [vmem:[%s463 + $0xa0] sm:$0xff]
        %v485 = vld [vmem:[%s463 + $0xa8] sm:$0xff]
        %v486 = vld [vmem:[%s463 + $0xb0] sm:$0xff]
        %v487 = vld [vmem:[%s463 + $0xb8] sm:$0xff]
        %v488 = vld [vmem:[%s463 + $0xc0] sm:$0xff]
        %v489 = vld [vmem:[%s463 + $0xc8] sm:$0xff]
        %v490 = vld [vmem:[%s463 + $0xd0] sm:$0xff]
        %v491 = vld [vmem:[%s463 + $0xd8] sm:$0xff]
        %v492 = vld [vmem:[%s463 + $0xe0] sm:$0xff]
        %v493 = vld [vmem:[%s463 + $0xe8] sm:$0xff]
        %v494 = vld [vmem:[%s463 + $0xf0] sm:$0xff]
        %v495 = vld [vmem:[%s463 + $0xf8] sm:$0xff]
        %s496 = scalar_lea.vmem %s2, 2
        %v497 = vld [vmem:[%s496] sm:$0x3]
        %v499 = vlaneseq
        %v500 = vshrl.u32 %v499, 7
        %v501 = vsub.s32 0, %v500
        %v502 = vrot.slane %v497, %v501
        %v503 = vlaneseq
        %v504 = vshrl.u32 %v503, 7
        %v505 = vsub.s32 1, %v504
        %v506 = vrot.slane %v497, %v505
        %v541 = vunpack.c.l.b16 %v464
        %v542 = vunpack.c.h.b16 %v464
        %v543 = vunpack.c.l.b16 %v465
        %v544 = vunpack.c.h.b16 %v465
        %v545 = vunpack.c.l.b16 %v466
        %v546 = vunpack.c.h.b16 %v466
        %v547 = vunpack.c.l.b16 %v467
        %v548 = vunpack.c.h.b16 %v467
        %v549 = vunpack.c.l.b16 %v468
        %v550 = vunpack.c.h.b16 %v468
        %v551 = vunpack.c.l.b16 %v469
        %v552 = vunpack.c.h.b16 %v469
        %v553 = vunpack.c.l.b16 %v470
        %v554 = vunpack.c.h.b16 %v470
        %v555 = vunpack.c.l.b16 %v471
        %v556 = vunpack.c.h.b16 %v471
        %v557 = vunpack.c.l.b16 %v472
        %v558 = vunpack.c.h.b16 %v472
        %v559 = vunpack.c.l.b16 %v473
        %v560 = vunpack.c.h.b16 %v473
        %v561 = vunpack.c.l.b16 %v474
        %v562 = vunpack.c.h.b16 %v474
        %v563 = vunpack.c.l.b16 %v475
        %v564 = vunpack.c.h.b16 %v475
        %v565 = vunpack.c.l.b16 %v476
        %v566 = vunpack.c.h.b16 %v476
        %v567 = vunpack.c.l.b16 %v477
        %v568 = vunpack.c.h.b16 %v477
        %v569 = vunpack.c.l.b16 %v478
        %v570 = vunpack.c.h.b16 %v478
        %v571 = vunpack.c.l.b16 %v479
        %v572 = vunpack.c.h.b16 %v479
        %v573 = vunpack.c.l.b16 %v480
        %v574 = vunpack.c.h.b16 %v480
        %v575 = vunpack.c.l.b16 %v481
        %v576 = vunpack.c.h.b16 %v481
        %v577 = vunpack.c.l.b16 %v482
        %v578 = vunpack.c.h.b16 %v482
        %v579 = vunpack.c.l.b16 %v483
        %v580 = vunpack.c.h.b16 %v483
        %v581 = vunpack.c.l.b16 %v484
        %v582 = vunpack.c.h.b16 %v484
        %v583 = vunpack.c.l.b16 %v485
        %v584 = vunpack.c.h.b16 %v485
        %v585 = vunpack.c.l.b16 %v486
        %v586 = vunpack.c.h.b16 %v486
        %v587 = vunpack.c.l.b16 %v487
        %v588 = vunpack.c.h.b16 %v487
        %v589 = vunpack.c.l.b16 %v488
        %v590 = vunpack.c.h.b16 %v488
        %v591 = vunpack.c.l.b16 %v489
        %v592 = vunpack.c.h.b16 %v489
        %v593 = vunpack.c.l.b16 %v490
        %v594 = vunpack.c.h.b16 %v490
        %v595 = vunpack.c.l.b16 %v491
        %v596 = vunpack.c.h.b16 %v491
        %v597 = vunpack.c.l.b16 %v492
        %v598 = vunpack.c.h.b16 %v492
        %v599 = vunpack.c.l.b16 %v493
        %v600 = vunpack.c.h.b16 %v493
        %v601 = vunpack.c.l.b16 %v494
        %v602 = vunpack.c.h.b16 %v494
        %v603 = vunpack.c.l.b16 %v495
        %v604 = vunpack.c.h.b16 %v495
        %v605 = vpack.c.b16 %v543, %v541
        %v606 = vpack.c.b16 %v544, %v542
        %v607 = vpack.c.b16 %v547, %v545
        %v608 = vpack.c.b16 %v548, %v546
        %v609 = vpack.c.b16 %v551, %v549
        %v610 = vpack.c.b16 %v552, %v550
        %v611 = vpack.c.b16 %v555, %v553
        %v612 = vpack.c.b16 %v556, %v554
        %v613 = vpack.c.b16 %v559, %v557
        %v614 = vpack.c.b16 %v560, %v558
        %v615 = vpack.c.b16 %v563, %v561
        %v616 = vpack.c.b16 %v564, %v562
        %v617 = vpack.c.b16 %v567, %v565
        %v618 = vpack.c.b16 %v568, %v566
        %v619 = vpack.c.b16 %v571, %v569
        %v620 = vpack.c.b16 %v572, %v570
        %v621 = vpack.c.b16 %v575, %v573
        %v622 = vpack.c.b16 %v576, %v574
        %v623 = vpack.c.b16 %v579, %v577
        %v624 = vpack.c.b16 %v580, %v578
        %v625 = vpack.c.b16 %v583, %v581
        %v626 = vpack.c.b16 %v584, %v582
        %v627 = vpack.c.b16 %v587, %v585
        %v628 = vpack.c.b16 %v588, %v586
        %v629 = vpack.c.b16 %v591, %v589
        %v630 = vpack.c.b16 %v592, %v590
        %v631 = vpack.c.b16 %v595, %v593
        %v632 = vpack.c.b16 %v596, %v594
        %v633 = vpack.c.b16 %v599, %v597
        %v634 = vpack.c.b16 %v600, %v598
        %v635 = vpack.c.b16 %v603, %v601
        %v636 = vpack.c.b16 %v604, %v602
        %669 = vmatprep.subr.bf16.mxu0 %v606
        %670 = vmatpush1.bf16.msra.mxu0 %v605
        %671 = vmatprep.subr.bf16.mxu0 %v608
        %672 = vmatpush1.bf16.msra.mxu0 %v607
        %673 = vmatprep.subr.bf16.mxu0 %v610
        %674 = vmatpush1.bf16.msra.mxu0 %v609
        %675 = vmatprep.subr.bf16.mxu0 %v612
        %676 = vmatpush1.bf16.msra.mxu0 %v611
        %677 = vmatprep.subr.bf16.mxu0 %v614
        %678 = vmatpush1.bf16.msra.mxu0 %v613
        %679 = vmatprep.subr.bf16.mxu0 %v616
        %680 = vmatpush1.bf16.msra.mxu0 %v615
        %681 = vmatprep.subr.bf16.mxu0 %v618
        %682 = vmatpush1.bf16.msra.mxu0 %v617
        %683 = vmatprep.subr.bf16.mxu0 %v620
        %684 = vmatpush1.bf16.msra.mxu0 %v619
        %685 = vmatprep.subr.bf16.mxu0 %v622
        %686 = vmatpush1.bf16.msra.mxu0 %v621
        %687 = vmatprep.subr.bf16.mxu0 %v624
        %688 = vmatpush1.bf16.msra.mxu0 %v623
        %689 = vmatprep.subr.bf16.mxu0 %v626
        %690 = vmatpush1.bf16.msra.mxu0 %v625
        %691 = vmatprep.subr.bf16.mxu0 %v628
        %692 = vmatpush1.bf16.msra.mxu0 %v627
        %693 = vmatprep.subr.bf16.mxu0 %v630
        %694 = vmatpush1.bf16.msra.mxu0 %v629
        %695 = vmatprep.subr.bf16.mxu0 %v632
        %696 = vmatpush1.bf16.msra.mxu0 %v631
        %697 = vmatprep.subr.bf16.mxu0 %v634
        %698 = vmatpush1.bf16.msra.mxu0 %v633
        %699 = vmatprep.subr.bf16.mxu0 %v636
        %700 = vmatpush1.bf16.msra.mxu0 %v635
        %701 = vmatprep.mubr.bf16.mxu0 %v462
        %702 = vmatmul.mubr.bf16.gmra.mrb[0].mxu0 %v461
        %v703 = vpop.f32.mrb[0].mxu0
        %v704 = vadd.f32 %v502, %v703
        %v705 = vpop.f32.mrb[0].mxu0
        %v706 = vadd.f32 %v506, %v705
        %v707 = vpop.f32.mrb[0].mxu0
        %v708 = vpop.f32.mrb[0].mxu0
        %709 = vdwg.mxu0
        %vm710 = vcmp.gt.f32.partialorder %v704, 0.0
        %vm711 = vcmp.gt.f32.partialorder %v706, 0.0
        %v712 = vmul.f32 %v704, 0.01
        %v713 = vmul.f32 %v706, 0.01
        %v714 = vsel %vm710, %v704, %v712
        %v715 = vsel %vm711, %v706, %v713
        %v716 = vpack.c.bf16 %v714, %v714
        %v717 = vpack.c.bf16 %v715, %v715
        %s718 = scalar_lea.vmem [#allocation5], 512
        %v719 = vld [vmem:[%s718] sm:$0xff]
        %v720 = vld [vmem:[%s718 + $0x8] sm:$0xff]
        %v721 = vld [vmem:[%s718 + $0x10] sm:$0xff]
        %v722 = vld [vmem:[%s718 + $0x18] sm:$0xff]
        %v723 = vld [vmem:[%s718 + $0x20] sm:$0xff]
        %v724 = vld [vmem:[%s718 + $0x28] sm:$0xff]
        %v725 = vld [vmem:[%s718 + $0x30] sm:$0xff]
        %v726 = vld [vmem:[%s718 + $0x38] sm:$0xff]
        %v727 = vld [vmem:[%s718 + $0x40] sm:$0xff]
        %v728 = vld [vmem:[%s718 + $0x48] sm:$0xff]
        %v729 = vld [vmem:[%s718 + $0x50] sm:$0xff]
        %v730 = vld [vmem:[%s718 + $0x58] sm:$0xff]
        %v731 = vld [vmem:[%s718 + $0x60] sm:$0xff]
        %v732 = vld [vmem:[%s718 + $0x68] sm:$0xff]
        %v733 = vld [vmem:[%s718 + $0x70] sm:$0xff]
        %v734 = vld [vmem:[%s718 + $0x78] sm:$0xff]
        %v735 = vld [vmem:[%s718 + $0x80] sm:$0xff]
        %v736 = vld [vmem:[%s718 + $0x88] sm:$0xff]
        %v737 = vld [vmem:[%s718 + $0x90] sm:$0xff]
        %v738 = vld [vmem:[%s718 + $0x98] sm:$0xff]
        %v739 = vld [vmem:[%s718 + $0xa0] sm:$0xff]
        %v740 = vld [vmem:[%s718 + $0xa8] sm:$0xff]
        %v741 = vld [vmem:[%s718 + $0xb0] sm:$0xff]
        %v742 = vld [vmem:[%s718 + $0xb8] sm:$0xff]
        %v743 = vld [vmem:[%s718 + $0xc0] sm:$0xff]
        %v744 = vld [vmem:[%s718 + $0xc8] sm:$0xff]
        %v745 = vld [vmem:[%s718 + $0xd0] sm:$0xff]
        %v746 = vld [vmem:[%s718 + $0xd8] sm:$0xff]
        %v747 = vld [vmem:[%s718 + $0xe0] sm:$0xff]
        %v748 = vld [vmem:[%s718 + $0xe8] sm:$0xff]
        %v749 = vld [vmem:[%s718 + $0xf0] sm:$0xff]
        %v750 = vld [vmem:[%s718 + $0xf8] sm:$0xff]
        %s751 = scalar_lea.vmem %s2, 4
        %v752 = vld [vmem:[%s751] sm:$0x3]
        %v754 = vlaneseq
        %v755 = vshrl.u32 %v754, 7
        %v756 = vsub.s32 0, %v755
        %v757 = vrot.slane %v752, %v756
        %v758 = vlaneseq
        %v759 = vshrl.u32 %v758, 7
        %v760 = vsub.s32 1, %v759
        %v761 = vrot.slane %v752, %v760
        %v796 = vunpack.c.l.b16 %v719
        %v797 = vunpack.c.h.b16 %v719
        %v798 = vunpack.c.l.b16 %v720
        %v799 = vunpack.c.h.b16 %v720
        %v800 = vunpack.c.l.b16 %v721
        %v801 = vunpack.c.h.b16 %v721
        %v802 = vunpack.c.l.b16 %v722
        %v803 = vunpack.c.h.b16 %v722
        %v804 = vunpack.c.l.b16 %v723
        %v805 = vunpack.c.h.b16 %v723
        %v806 = vunpack.c.l.b16 %v724
        %v807 = vunpack.c.h.b16 %v724
        %v808 = vunpack.c.l.b16 %v725
        %v809 = vunpack.c.h.b16 %v725
        %v810 = vunpack.c.l.b16 %v726
        %v811 = vunpack.c.h.b16 %v726
        %v812 = vunpack.c.l.b16 %v727
        %v813 = vunpack.c.h.b16 %v727
        %v814 = vunpack.c.l.b16 %v728
        %v815 = vunpack.c.h.b16 %v728
        %v816 = vunpack.c.l.b16 %v729
        %v817 = vunpack.c.h.b16 %v729
        %v818 = vunpack.c.l.b16 %v730
        %v819 = vunpack.c.h.b16 %v730
        %v820 = vunpack.c.l.b16 %v731
        %v821 = vunpack.c.h.b16 %v731
        %v822 = vunpack.c.l.b16 %v732
        %v823 = vunpack.c.h.b16 %v732
        %v824 = vunpack.c.l.b16 %v733
        %v825 = vunpack.c.h.b16 %v733
        %v826 = vunpack.c.l.b16 %v734
        %v827 = vunpack.c.h.b16 %v734
        %v828 = vunpack.c.l.b16 %v735
        %v829 = vunpack.c.h.b16 %v735
        %v830 = vunpack.c.l.b16 %v736
        %v831 = vunpack.c.h.b16 %v736
        %v832 = vunpack.c.l.b16 %v737
        %v833 = vunpack.c.h.b16 %v737
        %v834 = vunpack.c.l.b16 %v738
        %v835 = vunpack.c.h.b16 %v738
        %v836 = vunpack.c.l.b16 %v739
        %v837 = vunpack.c.h.b16 %v739
        %v838 = vunpack.c.l.b16 %v740
        %v839 = vunpack.c.h.b16 %v740
        %v840 = vunpack.c.l.b16 %v741
        %v841 = vunpack.c.h.b16 %v741
        %v842 = vunpack.c.l.b16 %v742
        %v843 = vunpack.c.h.b16 %v742
        %v844 = vunpack.c.l.b16 %v743
        %v845 = vunpack.c.h.b16 %v743
        %v846 = vunpack.c.l.b16 %v744
        %v847 = vunpack.c.h.b16 %v744
        %v848 = vunpack.c.l.b16 %v745
        %v849 = vunpack.c.h.b16 %v745
        %v850 = vunpack.c.l.b16 %v746
        %v851 = vunpack.c.h.b16 %v746
        %v852 = vunpack.c.l.b16 %v747
        %v853 = vunpack.c.h.b16 %v747
        %v854 = vunpack.c.l.b16 %v748
        %v855 = vunpack.c.h.b16 %v748
        %v856 = vunpack.c.l.b16 %v749
        %v857 = vunpack.c.h.b16 %v749
        %v858 = vunpack.c.l.b16 %v750
        %v859 = vunpack.c.h.b16 %v750
        %v860 = vpack.c.b16 %v798, %v796
        %v861 = vpack.c.b16 %v799, %v797
        %v862 = vpack.c.b16 %v802, %v800
        %v863 = vpack.c.b16 %v803, %v801
        %v864 = vpack.c.b16 %v806, %v804
        %v865 = vpack.c.b16 %v807, %v805
        %v866 = vpack.c.b16 %v810, %v808
        %v867 = vpack.c.b16 %v811, %v809
        %v868 = vpack.c.b16 %v814, %v812
        %v869 = vpack.c.b16 %v815, %v813
        %v870 = vpack.c.b16 %v818, %v816
        %v871 = vpack.c.b16 %v819, %v817
        %v872 = vpack.c.b16 %v822, %v820
        %v873 = vpack.c.b16 %v823, %v821
        %v874 = vpack.c.b16 %v826, %v824
        %v875 = vpack.c.b16 %v827, %v825
        %v876 = vpack.c.b16 %v830, %v828
        %v877 = vpack.c.b16 %v831, %v829
        %v878 = vpack.c.b16 %v834, %v832
        %v879 = vpack.c.b16 %v835, %v833
        %v880 = vpack.c.b16 %v838, %v836
        %v881 = vpack.c.b16 %v839, %v837
        %v882 = vpack.c.b16 %v842, %v840
        %v883 = vpack.c.b16 %v843, %v841
        %v884 = vpack.c.b16 %v846, %v844
        %v885 = vpack.c.b16 %v847, %v845
        %v886 = vpack.c.b16 %v850, %v848
        %v887 = vpack.c.b16 %v851, %v849
        %v888 = vpack.c.b16 %v854, %v852
        %v889 = vpack.c.b16 %v855, %v853
        %v890 = vpack.c.b16 %v858, %v856
        %v891 = vpack.c.b16 %v859, %v857
        %924 = vmatprep.subr.bf16.mxu0 %v861
        %925 = vmatpush1.bf16.msra.mxu0 %v860
        %926 = vmatprep.subr.bf16.mxu0 %v863
        %927 = vmatpush1.bf16.msra.mxu0 %v862
        %928 = vmatprep.subr.bf16.mxu0 %v865
        %929 = vmatpush1.bf16.msra.mxu0 %v864
        %930 = vmatprep.subr.bf16.mxu0 %v867
        %931 = vmatpush1.bf16.msra.mxu0 %v866
        %932 = vmatprep.subr.bf16.mxu0 %v869
        %933 = vmatpush1.bf16.msra.mxu0 %v868
        %934 = vmatprep.subr.bf16.mxu0 %v871
        %935 = vmatpush1.bf16.msra.mxu0 %v870
        %936 = vmatprep.subr.bf16.mxu0 %v873
        %937 = vmatpush1.bf16.msra.mxu0 %v872
        %938 = vmatprep.subr.bf16.mxu0 %v875
        %939 = vmatpush1.bf16.msra.mxu0 %v874
        %940 = vmatprep.subr.bf16.mxu0 %v877
        %941 = vmatpush1.bf16.msra.mxu0 %v876
        %942 = vmatprep.subr.bf16.mxu0 %v879
        %943 = vmatpush1.bf16.msra.mxu0 %v878
        %944 = vmatprep.subr.bf16.mxu0 %v881
        %945 = vmatpush1.bf16.msra.mxu0 %v880
        %946 = vmatprep.subr.bf16.mxu0 %v883
        %947 = vmatpush1.bf16.msra.mxu0 %v882
        %948 = vmatprep.subr.bf16.mxu0 %v885
        %949 = vmatpush1.bf16.msra.mxu0 %v884
        %950 = vmatprep.subr.bf16.mxu0 %v887
        %951 = vmatpush1.bf16.msra.mxu0 %v886
        %952 = vmatprep.subr.bf16.mxu0 %v889
        %953 = vmatpush1.bf16.msra.mxu0 %v888
        %954 = vmatprep.subr.bf16.mxu0 %v891
        %955 = vmatpush1.bf16.msra.mxu0 %v890
        %956 = vmatprep.mubr.bf16.mxu0 %v717
        %957 = vmatmul.mubr.bf16.gmra.mrb[0].mxu0 %v716
        %v958 = vpop.f32.mrb[0].mxu0
        %v959 = vadd.f32 %v757, %v958
        %v960 = vpop.f32.mrb[0].mxu0
        %v961 = vadd.f32 %v761, %v960
        %v962 = vpop.f32.mrb[0].mxu0
        %v963 = vpop.f32.mrb[0].mxu0
        %964 = vdwg.mxu0
        %965 = vst [vmem:[%s201] sm:$0xff] %v959
        %966 = vst [vmem:[%s201 + $0x8] sm:$0xff] %v961
        %s967 = sand.u32 %s97, 1
        %s968 = scalar_lea.sflag [#allocation4], %s967
        %s969 = sand.u32 %s97, 1
        %s970 = smul.addr %s969, 16
        %s971 = scalar_lea.vmem [#allocation7], %s970
        // Predicated region
        $region41: #{tpu_custom_call.1} parent=31 // pred_check
          %p972 = pneg %p107
        $region42: #{tpu_custom_call.1} parent=31 // pred_check_branch
          %974 = sbr.rel (%p972) target = $region44
        $region43: #{tpu_custom_call.1} parent=31 // pred_region
          %s976 = ssub.s32 256, 256
          %977 = vsyncadd %s968, %s976
          %s978 = smul.addr %s21, 2
          %s979 = smul.addr %s978, 128
          %s980 = scalar_lea.hbm %s3, %s979
          %s982 = sshll.u32 %s971, 4
          %s983 = int_to_ptr.vmem [resolvable:$true] %s982
          %985 = dma.vmem_to_hbm [thread:$0]  %s983, 256, %s980, %s968
        $region44: #{tpu_custom_call.1} parent=31 // pred_fallthru
          _
      $region32: #{tpu_custom_call.1} parent=5 // pred_fallthru
        _
      %p986 = scmp.le.s32.totalorder 2, %s16
      // Predicated region
      $region45: #{tpu_custom_call.1} parent=5 // pred_check
        %p987 = pneg %p986
      $region46: #{tpu_custom_call.1} parent=5 // pred_check_branch
        %989 = sbr.rel (%p987) target = $region48
      $region47: #{tpu_custom_call.1} parent=5 // pred_region
        %s990 = ssub.s32 %s16, 2
        // Predicated region
        $region49: #{tpu_custom_call.1} parent=47 // pred_check
          %p991 = pneg %p113
        $region50: #{tpu_custom_call.1} parent=47 // pred_check_branch
          %993 = sbr.rel (%p991) target = $region52
        $region51: #{tpu_custom_call.1} parent=47 // pred_region
          %s994 = sand.u32 %s98, 1
          %s995 = scalar_lea.sflag [#allocation4], %s994
          %s996 = sand.u32 %s98, 1
          %s997 = smul.addr %s996, 16
          %s998 = scalar_lea.vmem [#allocation7], %s997
          %999 = dma.done %s995, 256
        $region52: #{tpu_custom_call.1} parent=47 // pred_fallthru
          _
      $region48: #{tpu_custom_call.1} parent=5 // pred_fallthru
        _
    $region6: #{tpu_custom_call.1} parent=1 // loop_footer
      %s20 = sadd.s32 1, %s16
    $region7: #{tpu_custom_call.1} parent=1 // loop_footer_branch
      %15 = sbr.rel target = $region3
    $region8: #{tpu_custom_call.1} parent=1 // loop_exit
      _
    %1000 = vsyncpa [#allocation3], 1
    %s1001 = scalar_lea.sflag [#allocation3], 1
    %1002 = vsyncpa %s1001, 1
    %1003 = vsyncpa [#allocation6], 1
    %1004 = vsyncpa [#allocation4], 1
    %s1005 = scalar_lea.sflag [#allocation4], 1
    %1006 = vsyncpa %s1005, 1

</llo_original>
